<compile_context>
chip_gen: v5e
topology: v5e:2x2
jax: 0.10.0
libtpu: 0.0.40
codegen_flags: <defaults>
</compile_context>

<pallas_src>
import functools

import jax
import jax.numpy as jnp
from jax.experimental import pallas as pl
from jax.experimental.pallas import tpu as pltpu

_EPS = 1e-12  # matches torch.nn.functional.normalize default eps


def _netvlad_kernel(x_ref, w_ref, c_ref, o_ref, acc_ref, *, normalize_input):
    """One (batch n, spatial tile sj) step.

    x_ref:   (1, D, ts)  input-descriptor tile
    w_ref:   (K, D)      1x1-conv (soft-assignment) weight, no bias
    c_ref:   (K, D)      cluster centroids
    o_ref:   (1, K, D)   resident output block (written on last spatial tile)
    acc_ref: (K, D) f32  VMEM accumulator for the residual aggregation
    """
    sj = pl.program_id(1)

    @pl.when(sj == 0)
    def _():
        acc_ref[...] = jnp.zeros_like(acc_ref)

    x = x_ref[0].astype(jnp.float32)                          # (D, ts)
    if normalize_input:
        # F.normalize(x, p=2, dim=1): per-column L2 over channels.
        col_norm = jnp.sqrt(jnp.sum(x * x, axis=0, keepdims=True))
        x = x / jnp.maximum(col_norm, _EPS)

    w = w_ref[...].astype(jnp.float32)                        # (K, D)
    c = c_ref[...].astype(jnp.float32)                        # (K, D)

    # Soft assignment: 1x1 conv == (K, D) @ (D, ts); softmax over clusters K.
    logits = jnp.dot(w, x, preferred_element_type=jnp.float32)     # (K, ts)
    m = jnp.max(logits, axis=0, keepdims=True)
    e = jnp.exp(logits - m)
    a = e / jnp.sum(e, axis=0, keepdims=True)                      # (K, ts)

    # sum_s (x[:, s] - c[k, :]) * a[k, s]  ==  a @ x^T - c * sum_s a
    agg = jax.lax.dot_general(a, x, (((1,), (1,)), ((), ())),
                              preferred_element_type=jnp.float32)  # (K, D)
    acc_ref[...] += agg - c * jnp.sum(a, axis=1, keepdims=True)

    @pl.when(sj == pl.num_programs(1) - 1)
    def _():
        v = acc_ref[...]                                           # (K, D)
        # intra-normalization (per cluster, over D)
        v = v / jnp.maximum(jnp.sqrt(jnp.sum(v * v, axis=1, keepdims=True)), _EPS)
        # global L2 normalization over the flattened (K*D,) vector
        v = v / jnp.maximum(jnp.sqrt(jnp.sum(v * v)), _EPS)
        o_ref[0] = v.astype(o_ref.dtype)


def netvlad_forward(x, conv_w, centroids, *, normalize_input=True, block_s=None):
    """Pallas NetVLAD forward (base config).

    x:         (N, D, H, W) descriptors
    conv_w:    (K, D) soft-assignment 1x1-conv weight (bias-free)
    centroids: (K, D) cluster centroids
    returns:   (N, K * D) L2-normalized VLAD descriptors
    """
    N, D, H, W = x.shape
    K, Dw = conv_w.shape
    assert Dw == D and centroids.shape == (K, D)
    S = H * W

    # Free metadata reshape in the wrapper (no HBM copy, no kernel needed).
    x_flat = x.reshape(N, D, S)

    if block_s is None:
        if S % 128 == 0:
            block_s = min(S, 512)
            while S % block_s:
                block_s -= 128
        else:
            block_s = S          # full-extent block when S isn't lane-aligned
    assert S % block_s == 0
    num_s = S // block_s

    out = pl.pallas_call(
        functools.partial(_netvlad_kernel, normalize_input=normalize_input),
        out_shape=jax.ShapeDtypeStruct((N, K, D), x.dtype),
        grid=(N, num_s),
        in_specs=[
            pl.BlockSpec((1, D, block_s), lambda n, sj: (n, 0, sj)),
            pl.BlockSpec((K, D), lambda n, sj: (0, 0)),
            pl.BlockSpec((K, D), lambda n, sj: (0, 0)),
        ],
        out_specs=pl.BlockSpec((1, K, D), lambda n, sj: (n, 0, 0)),
        scratch_shapes=[pltpu.VMEM((K, D), jnp.float32)],
        compiler_params=pltpu.CompilerParams(
            dimension_semantics=("parallel", "arbitrary")),
    )(x_flat, conv_w, centroids)

    # Final flatten (N, K, D) -> (N, K*D) is again a free wrapper reshape.
    return out.reshape(N, K * D)


def _netvlad_ref(x, conv_w, centroids, *, normalize_input=True):
    """Pure-JAX reference mirroring PyTorch NetVLAD.forward (base config)."""
    N, D, H, W = x.shape
    if normalize_input:
        n = jnp.sqrt(jnp.sum(x * x, axis=1, keepdims=True))
        x = x / jnp.maximum(n, _EPS)
    xf = x.reshape(N, D, -1)
    soft = jnp.einsum('kd,nds->nks', conv_w, xf)
    soft = jax.nn.softmax(soft, axis=1)
    vlad = (jnp.einsum('nks,nds->nkd', soft, xf)
            - centroids[None] * jnp.sum(soft, axis=-1)[..., None])
    vlad = vlad / jnp.maximum(
        jnp.sqrt(jnp.sum(vlad * vlad, axis=2, keepdims=True)), _EPS)
    vlad = vlad.reshape(N, -1)
    vlad = vlad / jnp.maximum(
        jnp.sqrt(jnp.sum(vlad * vlad, axis=1, keepdims=True)), _EPS)
    return vlad


if __name__ == "__main__":
    # TODO(synk): args-gated branches (nv_pca projection, antiburst/getWeights
    # reweighting, nv_dustbin, ab_kp, useToken_nv token MLP) are not part of the
    # base forward and are not implemented here.
    key = jax.random.PRNGKey(0)
    kx, kw, kc = jax.random.split(key, 3)

    N, D, K, H, W = 2, 32, 16, 16, 16        # small shapes; S = H*W = 256
    x = jax.random.normal(kx, (N, D, H, W), dtype=jnp.float32)
    conv_w = jax.random.normal(kw, (K, D), dtype=jnp.float32)
    centroids = jax.random.normal(kc, (K, D), dtype=jnp.float32)

    # block_s=128 exercises the multi-tile spatial accumulation path (2 tiles).
    out = netvlad_forward(x, conv_w, centroids, block_s=128)
    out = jax.block_until_ready(out)

    ref = _netvlad_ref(x, conv_w, centroids)

    assert out.shape == (N, K * D), f"bad shape {out.shape}"
    assert out.dtype == x.dtype
    max_err = float(jnp.max(jnp.abs(out - ref)))
    assert max_err < 5e-3, f"mismatch vs reference, max abs err {max_err}"
    norms = jnp.sqrt(jnp.sum(out.astype(jnp.float32) ** 2, axis=1))
    assert bool(jnp.all(jnp.abs(norms - 1.0) < 1e-3)), "output not L2-normalized"

    print("KERNEL_OK")
</pallas_src>

<mosaic_0001>
module attributes {stable_mosaic.version = 11 : i64} {
  func.func @_netvlad_kernel(%arg0: i32, %arg1: i32, %arg2: memref<1x32x128xf32, #tpu.memory_space<vmem>>, %arg3: memref<16x32xf32, #tpu.memory_space<vmem>>, %arg4: memref<16x32xf32, #tpu.memory_space<vmem>>, %arg5: memref<1x16x32xf32, #tpu.memory_space<vmem>>, %arg6: memref<16x32xf32, #tpu.memory_space<vmem>>) attributes {dimension_semantics = [#tpu.dimension_semantics<parallel>, #tpu.dimension_semantics<arbitrary>], iteration_bounds = array<i64: 2, 2>, scalar_prefetch = 0 : i64, scratch_operands = 1 : i64, tpu.core_type = #tpu.core_type<tc>, window_params = [{transform_indices = @transform_0, window_bounds = array<i64: 1, 32, 128>}, {pipeline_mode = #tpu.pipeline_mode<synchronous>, transform_indices = @transform_1, window_bounds = array<i64: 16, 32>}, {pipeline_mode = #tpu.pipeline_mode<synchronous>, transform_indices = @transform_2, window_bounds = array<i64: 16, 32>}, {transform_indices = @transform_3, window_bounds = array<i64: 1, 16, 32>}]} {
    %c0_i32 = arith.constant 0 : i32
    %0 = arith.cmpi eq, %arg1, %c0_i32 : i32
    %1 = arith.extui %0 : i1 to i32
    %c0_i32_0 = arith.constant 0 : i32
    %2 = arith.cmpi ne, %1, %c0_i32_0 : i32
    scf.if %2 {
      %cst_18 = arith.constant 0.000000e+00 : f32
      %37 = vector.broadcast %cst_18 : f32 to vector<16x32xf32>
      %c0_19 = arith.constant 0 : index
      %c0_20 = arith.constant 0 : index
      %38 = vector.load %arg6[%c0_19, %c0_20] : memref<16x32xf32, #tpu.memory_space<vmem>>, vector<16x32xf32>
      tpu.vector_store %arg6[%c0_19, %c0_20], %37 {strides = array<i32>} : memref<16x32xf32, #tpu.memory_space<vmem>>, vector<16x32xf32>,
    } else {
    }
    %c0 = arith.constant 0 : index
    %c0_1 = arith.constant 0 : index
    %c0_2 = arith.constant 0 : index
    %3 = vector.load %arg2[%c0, %c0_1, %c0_2] : memref<1x32x128xf32, #tpu.memory_space<vmem>>, vector<1x32x128xf32>
    %4 = vector.shape_cast %3 : vector<1x32x128xf32> to vector<32x128xf32>
    %5 = arith.mulf %4, %4 : vector<32x128xf32>
    %cst = arith.constant dense<0.000000e+00> : vector<128xf32>
    %6 = vector.multi_reduction <add>, %5, %cst [0] : vector<32x128xf32> to vector<128xf32>
    %7 = vector.shape_cast %6 : vector<128xf32> to vector<1x128xf32>
    %8 = math.sqrt %7 : vector<1x128xf32>
    %cst_3 = arith.constant 9.99999996E-13 : f32
    %9 = vector.broadcast %cst_3 : f32 to vector<1x128xf32>
    %10 = arith.maximumf %8, %9 : vector<1x128xf32>
    %11 = vector.broadcast %10 : vector<1x128xf32> to vector<32x128xf32>
    %12 = arith.divf %4, %11 : vector<32x128xf32>
    %c0_4 = arith.constant 0 : index
    %c0_5 = arith.constant 0 : index
    %13 = vector.load %arg3[%c0_4, %c0_5] : memref<16x32xf32, #tpu.memory_space<vmem>>, vector<16x32xf32>
    %c0_6 = arith.constant 0 : index
    %c0_7 = arith.constant 0 : index
    %14 = vector.load %arg4[%c0_6, %c0_7] : memref<16x32xf32, #tpu.memory_space<vmem>>, vector<16x32xf32>
    %cst_8 = arith.constant dense<0.000000e+00> : vector<16x128xf32>
    %15 = tpu.matmul %13, %12, %cst_8 {dimension_numbers = #tpu.dot_dimension_numbers<[1], [0], [0], [1], [0, 0, 1, 1], [], []>} : vector<16x32xf32>, vector<32x128xf32>, vector<16x128xf32> -> vector<16x128xf32>
    %cst_9 = arith.constant dense<0xFF800000> : vector<128xf32>
    %16 = vector.multi_reduction <maximumf>, %15, %cst_9 [0] : vector<16x128xf32> to vector<128xf32>
    %17 = vector.shape_cast %16 : vector<128xf32> to vector<1x128xf32>
    %18 = vector.broadcast %17 : vector<1x128xf32> to vector<16x128xf32>
    %19 = arith.subf %15, %18 : vector<16x128xf32>
    %20 = math.exp %19 : vector<16x128xf32>
    %cst_10 = arith.constant dense<0.000000e+00> : vector<128xf32>
    %21 = vector.multi_reduction <add>, %20, %cst_10 [0] : vector<16x128xf32> to vector<128xf32>
    %22 = vector.shape_cast %21 : vector<128xf32> to vector<1x128xf32>
    %23 = vector.broadcast %22 : vector<1x128xf32> to vector<16x128xf32>
    %24 = arith.divf %20, %23 : vector<16x128xf32>
    %cst_11 = arith.constant dense<0.000000e+00> : vector<16x32xf32>
    %25 = tpu.matmul %24, %12, %cst_11 {dimension_numbers = #tpu.dot_dimension_numbers<[1], [1], [0], [0], [0, 0, 1, 0], [], []>} : vector<16x128xf32>, vector<32x128xf32>, vector<16x32xf32> -> vector<16x32xf32>
    %c0_12 = arith.constant 0 : index
    %c0_13 = arith.constant 0 : index
    %26 = vector.load %arg6[%c0_12, %c0_13] : memref<16x32xf32, #tpu.memory_space<vmem>>, vector<16x32xf32>
    %cst_14 = arith.constant dense<0.000000e+00> : vector<16xf32>
    %27 = vector.multi_reduction <add>, %24, %cst_14 [1] : vector<16x128xf32> to vector<16xf32>
    %28 = vector.shape_cast %27 : vector<16xf32> to vector<16x1xf32>
    %29 = vector.broadcast %28 : vector<16x1xf32> to vector<16x32xf32>
    %30 = arith.mulf %14, %29 : vector<16x32xf32>
    %31 = arith.subf %25, %30 : vector<16x32xf32>
    %32 = arith.addf %26, %31 : vector<16x32xf32>
    %c0_15 = arith.constant 0 : index
    %c0_16 = arith.constant 0 : index
    %33 = vector.load %arg6[%c0_15, %c0_16] : memref<16x32xf32, #tpu.memory_space<vmem>>, vector<16x32xf32>
    tpu.vector_store %arg6[%c0_15, %c0_16], %32 {strides = array<i32>} : memref<16x32xf32, #tpu.memory_space<vmem>>, vector<16x32xf32>,
    %c1_i32 = arith.constant 1 : i32
    %34 = arith.cmpi eq, %arg1, %c1_i32 : i32
    %35 = arith.extui %34 : i1 to i32
    %c0_i32_17 = arith.constant 0 : i32
    %36 = arith.cmpi ne, %35, %c0_i32_17 : i32
    scf.if %36 {
      %c0_18 = arith.constant 0 : index
      %c0_19 = arith.constant 0 : index
      %37 = vector.load %arg6[%c0_18, %c0_19] : memref<16x32xf32, #tpu.memory_space<vmem>>, vector<16x32xf32>
      %38 = arith.mulf %37, %37 : vector<16x32xf32>
      %cst_20 = arith.constant dense<0.000000e+00> : vector<16xf32>
      %39 = vector.multi_reduction <add>, %38, %cst_20 [1] : vector<16x32xf32> to vector<16xf32>
      %40 = vector.shape_cast %39 : vector<16xf32> to vector<16x1xf32>
      %41 = math.sqrt %40 : vector<16x1xf32>
      %cst_21 = arith.constant 9.99999996E-13 : f32
      %42 = vector.broadcast %cst_21 : f32 to vector<16x1xf32>
      %43 = arith.maximumf %41, %42 : vector<16x1xf32>
      %44 = vector.broadcast %43 : vector<16x1xf32> to vector<16x32xf32>
      %45 = arith.divf %37, %44 : vector<16x32xf32>
      %46 = arith.mulf %45, %45 : vector<16x32xf32>
      %47 = vector.shape_cast %46 : vector<16x32xf32> to vector<1x16x32xf32>
      %cst_22 = arith.constant dense<0.000000e+00> : vector<1xf32>
      %48 = vector.multi_reduction <add>, %47, %cst_22 [1, 2] : vector<1x16x32xf32> to vector<1xf32>
      %49 = vector.shape_cast %48 : vector<1xf32> to vector<1x1x1xf32>
      %50 = vector.extract %49[0, 0, 0] : f32 from vector<1x1x1xf32>
      %51 = math.sqrt %50 : f32
      %cst_23 = arith.constant 9.99999996E-13 : f32
      %52 = arith.maximumf %51, %cst_23 : f32
      %53 = vector.broadcast %52 : f32 to vector<16x32xf32>
      %54 = arith.divf %45, %53 : vector<16x32xf32>
      %c0_24 = arith.constant 0 : index
      %c0_25 = arith.constant 0 : index
      %c0_26 = arith.constant 0 : index
      %55 = vector.load %arg5[%c0_24, %c0_25, %c0_26] : memref<1x16x32xf32, #tpu.memory_space<vmem>>, vector<1x16x32xf32>
      %56 = vector.shape_cast %55 : vector<1x16x32xf32> to vector<16x32xf32>
      %57 = vector.shape_cast %54 : vector<16x32xf32> to vector<1x16x32xf32>
      tpu.vector_store %arg5[%c0_24, %c0_25, %c0_26], %57 {strides = array<i32>} : memref<1x16x32xf32, #tpu.memory_space<vmem>>, vector<1x16x32xf32>,
    } else {
    }
    return
  }
  func.func @transform_0(%arg0: i32, %arg1: i32) -> (i32, i32, i32) {
    %c0_i32 = arith.constant 0 : i32
    %c0_i32_0 = arith.constant 0 : i32
    return %arg0, %c0_i32, %arg1 : i32, i32, i32
  }
  func.func @transform_1(%arg0: i32, %arg1: i32) -> (i32, i32) {
    %c0_i32 = arith.constant 0 : i32
    %c0_i32_0 = arith.constant 0 : i32
    %c0_i32_1 = arith.constant 0 : i32
    return %c0_i32, %c0_i32_0 : i32, i32
  }
  func.func @transform_2(%arg0: i32, %arg1: i32) -> (i32, i32) {
    %c0_i32 = arith.constant 0 : i32
    %c0_i32_0 = arith.constant 0 : i32
    %c0_i32_1 = arith.constant 0 : i32
    return %c0_i32, %c0_i32_0 : i32, i32
  }
  func.func @transform_3(%arg0: i32, %arg1: i32) -> (i32, i32, i32) {
    %c0_i32 = arith.constant 0 : i32
    %c0_i32_0 = arith.constant 0 : i32
    %c0_i32_1 = arith.constant 0 : i32
    return %arg0, %c0_i32, %c0_i32_0 : i32, i32, i32
  }
}

</mosaic_0001>

<llo_original>
// kernel: tpu_custom_call.1
$region0: #{tpu_custom_call.1}
  #allocation0 [shape = 'u32[]', space=smem, size = 0x4, offset = 0x4, fixed_abs, tag = 'smem constant byte address 0x4 - core index']
  #allocation1 [shape = 'u32[72,128]{1,0:T(1,128)}', space=vmem, size = 0x9000, scoped, tag = 'internal scratch']
  #allocation2 [shape = 'f32[16,32]{1,0:T(8,128)}', space=vmem, size = 0x2000, scoped, tag = 'scratch operand']
  %s0 = inlined_call_operand.hbm [shape: f32[2,32,256], index: 0, kind: input, shape index: {}]
  %s1 = inlined_call_operand.hbm [shape: f32[16,32], index: 1, kind: input, shape index: {}]
  %s2 = inlined_call_operand.hbm [shape: f32[16,32], index: 2, kind: input, shape index: {}]
  %s3 = inlined_call_operand.hbm [shape: f32[2,16,32], index: 3, kind: output, shape index: {}]
  %s4 = sld [smem:[#allocation0]]
  $region65: #{tpu_custom_call.1} parent=0
    _
  %s6 = ssub.s32 1, %s4
  %s7 = scalar_select 0, %s6, %s4
  $region1: #{tpu_custom_call.1} parent=0
    #allocation3 [shape = 'u8[32768]{0}', space=vmem, size = 0x8000, scoped, tag = 'input window, operand 0']
    #allocation4 [shape = 's32[2]{0}', space=sflag, size = 0x8, scoped, tag = 'scoped memory for tpu_custom_call.1']
    #allocation5 [shape = 's32[2]{0}', space=sflag, size = 0x8, scoped, tag = 'scoped memory for tpu_custom_call.1']
    #allocation6 [shape = 'u8[8192]{0}', space=vmem, size = 0x2000, scoped, tag = 'input window, operand 1, single buffered']
    #allocation7 [shape = 's32[1]{0}', space=sflag, size = 0x4, scoped, tag = 'scoped memory for tpu_custom_call.1']
    #allocation8 [shape = 'u8[8192]{0}', space=vmem, size = 0x2000, scoped, tag = 'input window, operand 2, single buffered']
    #allocation9 [shape = 'u8[16384]{0}', space=vmem, size = 0x4000, scoped, tag = 'output window, operand 0']
    %8 = vsyncpa [#allocation4], 0
    %s9 = scalar_lea.sflag [#allocation4], 1
    %10 = vsyncpa %s9, 0
    %11 = vsyncpa [#allocation7], 0
    %12 = vsyncpa [#allocation5], 0
    %s13 = scalar_lea.sflag [#allocation5], 1
    %14 = vsyncpa %s13, 0
    loop: start=0, step=1, limit=6
    $region2: #{tpu_custom_call.1} parent=1 // loop_pre_header
      _
    $region3: #{tpu_custom_call.1} parent=1 // loop_header
      %s16 = sphi 0, %s20
      %p17 = scmp.ge.s32.totalorder %s16, 6
      %s23 = sphi 0, %s35
      %s24 = sphi 0, %s31
      %s25 = sphi 0, %s23
      %s26 = sphi 0, %s24
      %s27 = sphi 0, %s25
      %s28 = sphi 0, %s26
      %s40 = sphi 0, %s42
      %s43 = sphi 0, %s40
      %s44 = sphi 0, %s43
      %s60 = sphi 0, %s44
      %s64 = sphi 0, %s64
      %s66 = sphi 0, %s64
      %s67 = sphi 0, %s66
      %s81 = sphi 0, %s67
      %s85 = sphi 0, %s85
      %s87 = sphi 0, %s85
      %s88 = sphi 0, %s87
      %s102 = sphi 0, %s88
      %s108 = sphi 0, %s110
      %s111 = sphi 0, %s108
      %s112 = sphi 0, %s111
      %s128 = sphi 0, %s112
    $region4: #{tpu_custom_call.1} parent=1 // loop_header_branch
      %19 = sbr.rel (%p17) target = $region8
    $region5: #{tpu_custom_call.1} parent=1 // loop_body
      %s21 = ssub.s32 %s16, 1
      %s22 = ssub.s32 %s16, 2
      %s29 = sadd.s32 1, %s24
      %p30 = scmp.ge.s32.totalorder %s29, 2
      %s31 = scalar_select %p30, 0, %s29
      %s32 = sadd.s32 1, %s23
      %s33 = scalar_select %p30, %s32, %s23
      %p34 = scmp.ge.s32.totalorder %s33, 2
      %s35 = scalar_select %p34, 0, %s33
      %s36 = ssub.s32 %s23, %s35
      %s37 = ssub.s32 %s24, %s31
      %s38 = sor.u32 %s36, %s37
      %p39 = scmp.eq.s32.totalorder %s38, 0
      %s41 = sadd.s32 %s40, 1
      %s42 = scalar_select %p39, %s40, %s41
      %p45 = pneg %p39
      %p46 = scmp.eq.s32.totalorder %s16, 3
      %p47 = por %p45, %p46
      %p48 = scmp.ne.s32.totalorder %s40, %s43
      %p49 = scmp.eq.s32.totalorder %s16, 0
      %p50 = por %p48, %p49
      %p51 = scmp.ne.s32.totalorder %s40, %s43
      %p52 = scmp.eq.s32.totalorder %s21, 3
      %p53 = por %p51, %p52
      %p54 = scmp.ne.s32.totalorder %s43, %s44
      %p55 = scmp.eq.s32.totalorder %s21, 0
      %p56 = por %p54, %p55
      %p57 = scmp.ne.s32.totalorder %s43, %s44
      %p58 = scmp.eq.s32.totalorder %s22, 3
      %p59 = por %p57, %p58
      %p61 = scmp.ne.s32.totalorder %s44, %s60
      %p62 = scmp.eq.s32.totalorder %s22, 0
      %p63 = por %p61, %p62
      %s65 = sadd.s32 %s64, 1
      %p68 = scmp.eq.s32.totalorder %s16, 3
      %p69 = scmp.ne.s32.totalorder %s64, %s66
      %p70 = scmp.eq.s32.totalorder %s16, 0
      %p71 = por %p69, %p70
      %p72 = scmp.ne.s32.totalorder %s64, %s66
      %p73 = scmp.eq.s32.totalorder %s21, 3
      %p74 = por %p72, %p73
      %p75 = scmp.ne.s32.totalorder %s66, %s67
      %p76 = scmp.eq.s32.totalorder %s21, 0
      %p77 = por %p75, %p76
      %p78 = scmp.ne.s32.totalorder %s66, %s67
      %p79 = scmp.eq.s32.totalorder %s22, 3
      %p80 = por %p78, %p79
      %p82 = scmp.ne.s32.totalorder %s67, %s81
      %p83 = scmp.eq.s32.totalorder %s22, 0
      %p84 = por %p82, %p83
      %s86 = sadd.s32 %s85, 1
      %p89 = scmp.eq.s32.totalorder %s16, 3
      %p90 = scmp.ne.s32.totalorder %s85, %s87
      %p91 = scmp.eq.s32.totalorder %s16, 0
      %p92 = por %p90, %p91
      %p93 = scmp.ne.s32.totalorder %s85, %s87
      %p94 = scmp.eq.s32.totalorder %s21, 3
      %p95 = por %p93, %p94
      %p96 = scmp.ne.s32.totalorder %s87, %s88
      %p97 = scmp.eq.s32.totalorder %s21, 0
      %p98 = por %p96, %p97
      %p99 = scmp.ne.s32.totalorder %s87, %s88
      %p100 = scmp.eq.s32.totalorder %s22, 3
      %p101 = por %p99, %p100
      %p103 = scmp.ne.s32.totalorder %s88, %s102
      %p104 = scmp.eq.s32.totalorder %s22, 0
      %p105 = por %p103, %p104
      %s106 = ssub.s32 %s23, %s35
      %p107 = scmp.eq.s32.totalorder %s106, 0
      %s109 = sadd.s32 %s108, 1
      %s110 = scalar_select %p107, %s108, %s109
      %p113 = pneg %p107
      %p114 = scmp.eq.s32.totalorder %s16, 3
      %p115 = por %p113, %p114
      %p116 = scmp.ne.s32.totalorder %s108, %s111
      %p117 = scmp.eq.s32.totalorder %s16, 0
      %p118 = por %p116, %p117
      %p119 = scmp.ne.s32.totalorder %s108, %s111
      %p120 = scmp.eq.s32.totalorder %s21, 3
      %p121 = por %p119, %p120
      %p122 = scmp.ne.s32.totalorder %s111, %s112
      %p123 = scmp.eq.s32.totalorder %s21, 0
      %p124 = por %p122, %p123
      %p125 = scmp.ne.s32.totalorder %s111, %s112
      %p126 = scmp.eq.s32.totalorder %s22, 3
      %p127 = por %p125, %p126
      %p129 = scmp.ne.s32.totalorder %s112, %s128
      %p130 = scmp.eq.s32.totalorder %s22, 0
      %p131 = por %p129, %p130
      %p132 = scmp.le.s32.totalorder 1, %s16
      %p133 = scmp.lt.s32.totalorder %s16, 5
      %p134 = pnand %p132, %p133
      %p135 = pneg %p134
      // Predicated region
      $region9: #{tpu_custom_call.1} parent=5 // pred_check
        _
      $region10: #{tpu_custom_call.1} parent=5 // pred_check_branch
        %137 = sbr.rel (%p134) target = $region12
      $region11: #{tpu_custom_call.1} parent=5 // pred_region
        %s138 = ssub.s32 %s16, 1
        // Predicated region
        $region13: #{tpu_custom_call.1} parent=11 // pred_check
          %p139 = pneg %p77
        $region14: #{tpu_custom_call.1} parent=11 // pred_check_branch
          %141 = sbr.rel (%p139) target = $region16
        $region15: #{tpu_custom_call.1} parent=11 // pred_region
          %143 = vsyncadd [#allocation7], 0
          %s144 = sshll.u32 %s1, 4
          %s145 = int_to_ptr.hbm [resolvable:$true] %s144
          %s146 = sshll.u32 [#allocation6], 4
          %s147 = int_to_ptr.vmem [resolvable:$true] %s146
          %152 = dma.hbm_to_vmem [thread:$0]  %s145, 256, %s147, [#allocation7], 128, 128, 8
        $region16: #{tpu_custom_call.1} parent=11 // pred_fallthru
          _
        // Predicated region
        $region17: #{tpu_custom_call.1} parent=11 // pred_check
          %p153 = pneg %p98
        $region18: #{tpu_custom_call.1} parent=11 // pred_check_branch
          %155 = sbr.rel (%p153) target = $region20
        $region19: #{tpu_custom_call.1} parent=11 // pred_region
          %157 = vsyncadd [#allocation7], 0
          %s158 = sshll.u32 %s2, 4
          %s159 = int_to_ptr.hbm [resolvable:$true] %s158
          %s160 = sshll.u32 [#allocation8], 4
          %s161 = int_to_ptr.vmem [resolvable:$true] %s160
          %166 = dma.hbm_to_vmem [thread:$0]  %s159, 256, %s161, [#allocation7], 128, 128, 8
        $region20: #{tpu_custom_call.1} parent=11 // pred_fallthru
          _
      $region12: #{tpu_custom_call.1} parent=5 // pred_fallthru
        _
      %p167 = scmp.lt.s32.totalorder %s16, 4
      // Predicated region
      $region21: #{tpu_custom_call.1} parent=5 // pred_check
        %p168 = pneg %p167
      $region22: #{tpu_custom_call.1} parent=5 // pred_check_branch
        %170 = sbr.rel (%p168) target = $region24
      $region23: #{tpu_custom_call.1} parent=5 // pred_region
        // Predicated region
        $region25: #{tpu_custom_call.1} parent=23 // pred_check
          %p171 = pneg %p50
        $region26: #{tpu_custom_call.1} parent=23 // pred_check_branch
          %173 = sbr.rel (%p171) target = $region28
        $region27: #{tpu_custom_call.1} parent=23 // pred_region
          %s174 = sand.u32 %s40, 1
          %s175 = scalar_lea.sflag [#allocation4], %s174
          %s176 = sand.u32 %s40, 1
          %s177 = smul.addr %s176, 32
          %s178 = scalar_lea.vmem [#allocation3], %s177
          %180 = vsyncadd %s175, 0
          %s181 = smul.addr %s23, 8
          %s182 = sadd.s32 %s24, %s181
          %s183 = smul.addr %s182, 8
          %s184 = scalar_lea.hbm %s0, %s183
          %s185 = sshll.u32 %s184, 4
          %s186 = int_to_ptr.hbm [resolvable:$true] %s185
          %s187 = sshll.u32 %s178, 4
          %s188 = int_to_ptr.vmem [resolvable:$true] %s187
          %193 = dma.hbm_to_vmem [thread:$0]  %s186, 512, %s188, %s175, 256, 128, 8
        $region28: #{tpu_custom_call.1} parent=23 // pred_fallthru
          _
      $region24: #{tpu_custom_call.1} parent=5 // pred_fallthru
        _
      %p194 = scmp.le.s32.totalorder 1, %s16
      %p195 = scmp.lt.s32.totalorder %s16, 5
      %p196 = pnand %p194, %p195
      %p197 = pneg %p196
      // Predicated region
      $region29: #{tpu_custom_call.1} parent=5 // pred_check
        _
      $region30: #{tpu_custom_call.1} parent=5 // pred_check_branch
        %199 = sbr.rel (%p196) target = $region32
      $region31: #{tpu_custom_call.1} parent=5 // pred_region
        %s200 = ssub.s32 %s16, 1
        %s201 = sand.u32 %s43, 1
        %s202 = scalar_lea.sflag [#allocation4], %s201
        %s203 = sand.u32 %s43, 1
        %s204 = smul.addr %s203, 32
        %s205 = scalar_lea.vmem [#allocation3], %s204
        // Predicated region
        $region33: #{tpu_custom_call.1} parent=31 // pred_check
          %p206 = pneg %p56
        $region34: #{tpu_custom_call.1} parent=31 // pred_check_branch
          %208 = sbr.rel (%p206) target = $region36
        $region35: #{tpu_custom_call.1} parent=31 // pred_region
          %210 = dma.done %s202, 512
        $region36: #{tpu_custom_call.1} parent=31 // pred_fallthru
          _
        // Predicated region
        $region37: #{tpu_custom_call.1} parent=31 // pred_check
          %p211 = pneg %p77
        $region38: #{tpu_custom_call.1} parent=31 // pred_check_branch
          %213 = sbr.rel (%p211) target = $region40
        $region39: #{tpu_custom_call.1} parent=31 // pred_region
          %215 = dma.done [#allocation7], 256
        $region40: #{tpu_custom_call.1} parent=31 // pred_fallthru
          _
        // Predicated region
        $region41: #{tpu_custom_call.1} parent=31 // pred_check
          %p216 = pneg %p98
        $region42: #{tpu_custom_call.1} parent=31 // pred_check_branch
          %218 = sbr.rel (%p216) target = $region44
        $region43: #{tpu_custom_call.1} parent=31 // pred_region
          %220 = dma.done [#allocation7], 256
        $region44: #{tpu_custom_call.1} parent=31 // pred_fallthru
          _
        %s221 = sand.u32 %s43, 1
        %s222 = scalar_lea.sflag [#allocation4], %s221
        %s223 = sand.u32 %s43, 1
        %s224 = smul.addr %s223, 32
        %s225 = scalar_lea.vmem [#allocation3], %s224
        %p226 = pneg %p56
        %p227 = pneg %p53
        %p228 = pneg %p77
        %p229 = pneg %p74
        %p230 = pneg %p98
        %p231 = pneg %p95
        %p232 = pneg %p124
        %p233 = pneg %p121
        %s234 = sand.u32 %s111, 1
        %s235 = scalar_lea.sflag [#allocation5], %s234
        %s236 = sand.u32 %s111, 1
        %s237 = smul.addr %s236, 16
        %s238 = scalar_lea.vmem [#allocation9], %s237
        %p239 = scmp.eq.s32.totalorder %s26, 0
        // Predicated region
        $region45: #{tpu_custom_call.1} parent=31 // pred_check
          %p240 = pneg %p239
        $region46: #{tpu_custom_call.1} parent=31 // pred_check_branch
          %242 = sbr.rel (%p240) target = $region48
        $region47: #{tpu_custom_call.1} parent=31 // pred_region
          %vm243 = vcmask 261120
          %244 = vst.msk [vmem:[#allocation2] sm:$0xff] %vm243, 0.0
          %245 = vst.msk [vmem:[#allocation2 + $0x8] sm:$0xff] %vm243, 0.0
        $region48: #{tpu_custom_call.1} parent=31 // pred_fallthru
          _
        %v246 = vld [vmem:[%s205] sm:$0xff]
        %v247 = vld [vmem:[%s205 + $0x8] sm:$0xff]
        %v248 = vld [vmem:[%s205 + $0x10] sm:$0xff]
        %v249 = vld [vmem:[%s205 + $0x18] sm:$0xff]
        %v250 = vmul.f32 %v246, %v246
        %v251 = vmul.f32 %v247, %v247
        %v252 = vmul.f32 %v248, %v248
        %v253 = vmul.f32 %v249, %v249
        %v254 = vadd.f32 %v250, %v251
        %v255 = vadd.f32 %v254, %v252
        %v256 = vadd.f32 %v255, %v253
        %v257 = vrot.slane %v256, 4
        %v258 = vadd.f32 %v256, %v257
        %v259 = vrot.slane %v258, 2
        %v260 = vadd.f32 %v258, %v259
        %v261 = vrot.slane %v260, 1
        %v262 = vadd.f32 %v260, %v261
        %v263 = vrsqrt.pop %v262
        %v264 = vmul.f32 %v263, %v262
        %v265 = vmul.f32 %v264, %v263
        %v266 = vmul.f32 0.5, %v265
        %v267 = vsub.f32 1.5, %v266
        %v268 = vmul.f32 %v263, %v267
        %v269 = vmul.f32 %v262, %v268
        %vm270 = vcmp.eq.f32.partialorder %v262, inf
        %v271 = vsel %vm270, %v262, %v269
        %vm272 = vcmp.eq.f32.partialorder %v262, 0.0
        %v273 = vand.u32 %v262, 2147483648
        %v274 = vsel %vm272, %v273, %v271
        %v275 = vmax.f32 %v274, 1e-12
        %v276 = vrcp.pop %v275
        %v277 = vmul.f32 %v275, %v276
        %v278 = vsub.f32 1.0, %v277
        %v279 = vmul.f32 %v276, %v278
        %v280 = vadd.f32 %v276, %v279
        %vm281 = vweird.f32 %v275
        %vm282 = vweird.f32 %v276
        %vm283 = vmor %vm281, %vm282
        %v284 = vsel %vm283, %v276, %v280
        %v285 = vand.u32 2147483647, %v275
        %vm286 = vcmp.eq.f32.partialorder %v285, 8.507059e+37
        %v287 = vand.u32 %v275, 2147483648
        %v288 = vor.u32 1.1754944e-38, %v287
        %v289 = vsel %vm286, %v288, %v284
        %v290 = vmul.f32 %v246, %v289
        %v291 = vmul.f32 %v247, %v289
        %v292 = vmul.f32 %v248, %v289
        %v293 = vmul.f32 %v249, %v289
        %v294 = vld [vmem:[#allocation6] sm:$0xff]
        %v295 = vld [vmem:[#allocation6 + $0x8] sm:$0xff]
        %v296 = vld [vmem:[#allocation8] sm:$0xff]
        %v297 = vld [vmem:[#allocation8 + $0x8] sm:$0xff]
        %vm298 = vcmask 261120
        %v300 = vsel %vm298, %v294, 0
        %v303 = vsel %vm298, %v295, 0
        %305 = vmatpush.msra.mxu0 0.0
        %306 = vmatpush.msra.mxu0 0.0
        %307 = vmatpush.msra.mxu0 0.0
        %308 = vmatpush.msra.mxu0 0.0
        %309 = vmatpush.msra.mxu0 0.0
        %310 = vmatpush.msra.mxu0 0.0
        %311 = vmatpush.msra.mxu0 0.0
        %312 = vmatpush.msra.mxu0 0.0
        %313 = vmatpush.msra.mxu0 0.0
        %314 = vmatpush.msra.mxu0 0.0
        %315 = vmatpush.msra.mxu0 0.0
        %316 = vmatpush.msra.mxu0 0.0
        %317 = vmatpush.msra.mxu0 %v293
        %318 = vmatpush.msra.mxu0 %v292
        %319 = vmatpush.msra.mxu0 %v291
        %320 = vmatpush.msra.mxu0 %v290
        %321 = vmatmul.f32.gmra.mxu0 %v300
        %v322 = vpop.f32.mrf.mxu0
        %v323 = vadd.f32 0.0, %v322
        %324 = vmatmul.f32.gmra.mxu0 %v303
        %v325 = vpop.f32.mrf.mxu0
        %v326 = vadd.f32 0.0, %v325
        %327 = vdwg.mxu0
        %v328 = vmax.f32 %v323, %v326
        %v329 = vrot.slane %v328, 4
        %v330 = vmax.f32 %v328, %v329
        %v331 = vrot.slane %v330, 2
        %v332 = vmax.f32 %v330, %v331
        %v333 = vrot.slane %v332, 1
        %v334 = vmax.f32 %v332, %v333
        %v335 = vsub.f32 %v323, %v334
        %v336 = vsub.f32 %v326, %v334
        %v337 = vmul.f32 %v335, 1.442695
        %v338 = vpow.pop %v337
        %v339 = vmul.f32 %v336, 1.442695
        %v340 = vpow.pop %v339
        %v341 = vadd.f32 %v338, %v340
        %v342 = vrot.slane %v341, 4
        %v343 = vadd.f32 %v341, %v342
        %v344 = vrot.slane %v343, 2
        %v345 = vadd.f32 %v343, %v344
        %v346 = vrot.slane %v345, 1
        %v347 = vadd.f32 %v345, %v346
        %v348 = vrcp.pop %v347
        %v349 = vmul.f32 %v347, %v348
        %v350 = vsub.f32 1.0, %v349
        %v351 = vmul.f32 %v348, %v350
        %v352 = vadd.f32 %v348, %v351
        %vm353 = vweird.f32 %v347
        %vm354 = vweird.f32 %v348
        %vm355 = vmor %vm353, %vm354
        %v356 = vsel %vm355, %v348, %v352
        %v357 = vand.u32 2147483647, %v347
        %vm358 = vcmp.eq.f32.partialorder %v357, 8.507059e+37
        %v359 = vand.u32 %v347, 2147483648
        %v360 = vor.u32 1.1754944e-38, %v359
        %v361 = vsel %vm358, %v360, %v356
        %v362 = vmul.f32 %v338, %v361
        %v363 = vmul.f32 %v340, %v361
        %364 = vmatpush.xpose.msra.mxu0 0.0
        %365 = vmatpush.xpose.msra.mxu0 0.0
        %366 = vmatpush.xpose.msra.mxu0 0.0
        %367 = vmatpush.xpose.msra.mxu0 0.0
        %368 = vmatpush.xpose.msra.mxu0 0.0
        %369 = vmatpush.xpose.msra.mxu0 0.0
        %370 = vmatpush.xpose.msra.mxu0 0.0
        %371 = vmatpush.xpose.msra.mxu0 0.0
        %372 = vmatpush.xpose.msra.mxu0 0.0
        %373 = vmatpush.xpose.msra.mxu0 0.0
        %374 = vmatpush.xpose.msra.mxu0 0.0
        %375 = vmatpush.xpose.msra.mxu0 0.0
        %376 = vmatpush.xpose.msra.mxu0 %v293
        %377 = vmatpush.xpose.msra.mxu0 %v292
        %378 = vmatpush.xpose.msra.mxu0 %v291
        %379 = vmatpush.xpose.msra.mxu0 %v290
        %380 = vmatmul.f32.gmra.mxu0 %v362
        %v381 = vpop.f32.mrf.mxu0
        %v382 = vadd.f32 0.0, %v381
        %383 = vmatmul.f32.gmra.mxu0 %v363
        %v384 = vpop.f32.mrf.mxu0
        %v385 = vadd.f32 0.0, %v384
        %386 = vdwg.mxu0
        %v387 = vld [vmem:[#allocation2] sm:$0xff]
        %v388 = vld [vmem:[#allocation2 + $0x8] sm:$0xff]
        %389 = vadd.xlane.f32.xlu0 %v362
        %v390 = vpop.xlane.xlu0 %389
        %391 = vadd.xlane.f32.xlu0 %v363
        %v392 = vpop.xlane.xlu0 %391
        %v393 = vmul.f32 %v296, %v390
        %v394 = vmul.f32 %v297, %v392
        %v395 = vsub.f32 %v382, %v393
        %v396 = vsub.f32 %v385, %v394
        %v397 = vadd.f32 %v387, %v395
        %v398 = vadd.f32 %v388, %v396
        %399 = vst.msk [vmem:[#allocation2] sm:$0xff] %vm298, %v397
        %400 = vst.msk [vmem:[#allocation2 + $0x8] sm:$0xff] %vm298, %v398
        %p401 = scmp.eq.s32.totalorder %s26, 1
        // Predicated region
        $region49: #{tpu_custom_call.1} parent=31 // pred_check
          %p402 = pneg %p401
        $region50: #{tpu_custom_call.1} parent=31 // pred_check_branch
          %404 = sbr.rel (%p402) target = $region52
        $region51: #{tpu_custom_call.1} parent=31 // pred_region
          %v405 = vld [vmem:[#allocation2] sm:$0xff]
          %v406 = vld [vmem:[#allocation2 + $0x8] sm:$0xff]
          %v407 = vmul.f32 %v405, %v405
          %v408 = vmul.f32 %v406, %v406
          %v409 = vsel %vm298, %v407, 0.0
          %410 = vadd.xlane.f32.xlu0 %v409
          %v411 = vpop.xlane.xlu0 %410
          %v412 = vsel %vm298, %v408, 0.0
          %413 = vadd.xlane.f32.xlu0 %v412
          %v414 = vpop.xlane.xlu0 %413
          %v415 = vrsqrt.pop %v411
          %v416 = vmul.f32 %v415, %v411
          %v417 = vmul.f32 %v416, %v415
          %v418 = vmul.f32 0.5, %v417
          %v419 = vsub.f32 1.5, %v418
          %v420 = vmul.f32 %v415, %v419
          %v421 = vmul.f32 %v411, %v420
          %vm422 = vcmp.eq.f32.partialorder %v411, inf
          %v423 = vsel %vm422, %v411, %v421
          %vm424 = vcmp.eq.f32.partialorder %v411, 0.0
          %v425 = vand.u32 %v411, 2147483648
          %v426 = vsel %vm424, %v425, %v423
          %v427 = vrsqrt.pop %v414
          %v428 = vmul.f32 %v427, %v414
          %v429 = vmul.f32 %v428, %v427
          %v430 = vmul.f32 0.5, %v429
          %v431 = vsub.f32 1.5, %v430
          %v432 = vmul.f32 %v427, %v431
          %v433 = vmul.f32 %v414, %v432
          %vm434 = vcmp.eq.f32.partialorder %v414, inf
          %v435 = vsel %vm434, %v414, %v433
          %vm436 = vcmp.eq.f32.partialorder %v414, 0.0
          %v437 = vand.u32 %v414, 2147483648
          %v438 = vsel %vm436, %v437, %v435
          %v439 = vmax.f32 %v426, 1e-12
          %v440 = vmax.f32 %v438, 1e-12
          %v441 = vrcp.pop %v439
          %v442 = vmul.f32 %v439, %v441
          %v443 = vsub.f32 1.0, %v442
          %v444 = vmul.f32 %v441, %v443
          %v445 = vadd.f32 %v441, %v444
          %vm446 = vweird.f32 %v439
          %vm447 = vweird.f32 %v441
          %vm448 = vmor %vm446, %vm447
          %v449 = vsel %vm448, %v441, %v445
          %v450 = vand.u32 2147483647, %v439
          %vm451 = vcmp.eq.f32.partialorder %v450, 8.507059e+37
          %v452 = vand.u32 %v439, 2147483648
          %v453 = vor.u32 1.1754944e-38, %v452
          %v454 = vsel %vm451, %v453, %v449
          %v455 = vmul.f32 %v405, %v454
          %v456 = vrcp.pop %v440
          %v457 = vmul.f32 %v440, %v456
          %v458 = vsub.f32 1.0, %v457
          %v459 = vmul.f32 %v456, %v458
          %v460 = vadd.f32 %v456, %v459
          %vm461 = vweird.f32 %v440
          %vm462 = vweird.f32 %v456
          %vm463 = vmor %vm461, %vm462
          %v464 = vsel %vm463, %v456, %v460
          %v465 = vand.u32 2147483647, %v440
          %vm466 = vcmp.eq.f32.partialorder %v465, 8.507059e+37
          %v467 = vand.u32 %v440, 2147483648
          %v468 = vor.u32 1.1754944e-38, %v467
          %v469 = vsel %vm466, %v468, %v464
          %v470 = vmul.f32 %v406, %v469
          %v471 = vmul.f32 %v455, %v455
          %v472 = vmul.f32 %v470, %v470
          %v473 = vsel %vm298, %v471, 0.0
          %v474 = vsel %vm298, %v472, 0.0
          %v475 = vadd.f32 %v473, %v474
          %476 = vadd.xlane.f32.xlu0 %v475
          %v477 = vpop.xlane.xlu0 %476
          %v478 = vrot.slane %v477, 4
          %v479 = vadd.f32 %v477, %v478
          %v480 = vrot.slane %v479, 2
          %v481 = vadd.f32 %v479, %v480
          %v482 = vrot.slane %v481, 1
          %v483 = vadd.f32 %v481, %v482
          %s484 = vtos %v483
          %v485 = vstv %s484
          %v486 = vrsqrt.pop %v485
          %v487 = vmul.f32 %v486, %v485
          %v488 = vmul.f32 %v487, %v486
          %v489 = vmul.f32 0.5, %v488
          %v490 = vsub.f32 1.5, %v489
          %v491 = vmul.f32 %v486, %v490
          %v492 = vmul.f32 %v485, %v491
          %vm493 = vcmp.eq.f32.partialorder %v485, inf
          %v494 = vsel %vm493, %v485, %v492
          %vm495 = vcmp.eq.f32.partialorder %v485, 0.0
          %v496 = vand.u32 %v485, 2147483648
          %v497 = vsel %vm495, %v496, %v494
          %s498 = vtos %v497
          %s499 = smax.f32 %s498, 1e-12
          %v500 = vstv %s499
          %v501 = vrcp.pop %v500
          %v502 = vmul.f32 %v500, %v501
          %v503 = vsub.f32 1.0, %v502
          %v504 = vmul.f32 %v501, %v503
          %v505 = vadd.f32 %v501, %v504
          %vm506 = vweird.f32 %v500
          %vm507 = vweird.f32 %v501
          %vm508 = vmor %vm506, %vm507
          %v509 = vsel %vm508, %v501, %v505
          %v510 = vand.u32 2147483647, %v500
          %vm511 = vcmp.eq.f32.partialorder %v510, 8.507059e+37
          %v512 = vand.u32 %v500, 2147483648
          %v513 = vor.u32 1.1754944e-38, %v512
          %v514 = vsel %vm511, %v513, %v509
          %v515 = vmul.f32 %v455, %v514
          %v516 = vmul.f32 %v470, %v514
          %517 = vst.msk [vmem:[%s238] sm:$0xff] %vm298, %v515
          %518 = vst.msk [vmem:[%s238 + $0x8] sm:$0xff] %vm298, %v516
        $region52: #{tpu_custom_call.1} parent=31 // pred_fallthru
          _
        %s519 = sand.u32 %s111, 1
        %s520 = scalar_lea.sflag [#allocation5], %s519
        %s521 = sand.u32 %s111, 1
        %s522 = smul.addr %s521, 16
        %s523 = scalar_lea.vmem [#allocation9], %s522
        // Predicated region
        $region53: #{tpu_custom_call.1} parent=31 // pred_check
          %p524 = pneg %p121
        $region54: #{tpu_custom_call.1} parent=31 // pred_check_branch
          %526 = sbr.rel (%p524) target = $region56
        $region55: #{tpu_custom_call.1} parent=31 // pred_region
          %528 = vsyncadd %s520, 0
          %s529 = smul.addr %s25, 2
          %s530 = smul.addr %s529, 8
          %s531 = scalar_lea.hbm %s3, %s530
          %s532 = sshll.u32 %s523, 4
          %s533 = int_to_ptr.vmem [resolvable:$true] %s532
          %s534 = sshll.u32 %s531, 4
          %s535 = int_to_ptr.hbm [resolvable:$true] %s534
          %540 = dma.vmem_to_hbm [thread:$0]  %s533, 256, %s535, %s520, 128, 128, 8
        $region56: #{tpu_custom_call.1} parent=31 // pred_fallthru
          _
      $region32: #{tpu_custom_call.1} parent=5 // pred_fallthru
        _
      %p541 = scmp.le.s32.totalorder 2, %s16
      // Predicated region
      $region57: #{tpu_custom_call.1} parent=5 // pred_check
        %p542 = pneg %p541
      $region58: #{tpu_custom_call.1} parent=5 // pred_check_branch
        %544 = sbr.rel (%p542) target = $region60
      $region59: #{tpu_custom_call.1} parent=5 // pred_region
        %s545 = ssub.s32 %s16, 2
        // Predicated region
        $region61: #{tpu_custom_call.1} parent=59 // pred_check
          %p546 = pneg %p127
        $region62: #{tpu_custom_call.1} parent=59 // pred_check_branch
          %548 = sbr.rel (%p546) target = $region64
        $region63: #{tpu_custom_call.1} parent=59 // pred_region
          %s549 = sand.u32 %s112, 1
          %s550 = scalar_lea.sflag [#allocation5], %s549
          %s551 = sand.u32 %s112, 1
          %s552 = smul.addr %s551, 16
          %s553 = scalar_lea.vmem [#allocation9], %s552
          %555 = dma.done %s550, 256
        $region64: #{tpu_custom_call.1} parent=59 // pred_fallthru
          _
      $region60: #{tpu_custom_call.1} parent=5 // pred_fallthru
        _
    $region6: #{tpu_custom_call.1} parent=1 // loop_footer
      %s20 = sadd.s32 1, %s16
    $region7: #{tpu_custom_call.1} parent=1 // loop_footer_branch
      %15 = sbr.rel target = $region3
    $region8: #{tpu_custom_call.1} parent=1 // loop_exit
      _
    %556 = vsyncpa [#allocation4], 1
    %s557 = scalar_lea.sflag [#allocation4], 1
    %558 = vsyncpa %s557, 1
    %559 = vsyncpa [#allocation7], 1
    %560 = vsyncpa [#allocation5], 1
    %s561 = scalar_lea.sflag [#allocation5], 1
    %562 = vsyncpa %s561, 1

</llo_original>
